<compile_context>
chip_gen: v5e
topology: v5e:2x2
jax: 0.10.0
libtpu: 0.0.40
codegen_flags: <defaults>
</compile_context>

<pallas_src>
import functools

import jax
import jax.numpy as jnp
from jax.experimental import pallas as pl
from jax.experimental.pallas import tpu as pltpu

# ----- model dimensions -----
DIM_OF_OBSERVATION = 64      # feature_len (Config.DIM_OF_OBSERVATION)
HIDDEN1 = 256
HIDDEN2 = 128
ACTION_DIM = 8               # action_shape

DEFAULT_BATCH_TILE = 512     # big tiles: this kernel is HBM-bandwidth / overhead bound


def _round_up(x: int, m: int) -> int:
    return ((x + m - 1) // m) * m


def mlp_kernel(x_ref, w1_ref, b1_ref, w2_ref, b2_ref, w3_ref, b3_ref, o_ref):
    """One batch tile of the 3-layer MLP. Weights are VMEM-resident across grid steps."""
    # cast to the compute dtype in-kernel (no-op for f32; avoids a wrapper XLA pass for bf16)
    x = x_ref[...].astype(w1_ref.dtype)                               # (TB, 64)

    # fc1 + ReLU   (bias add / ReLU stay in f32 -> safe on v5e VPU too)
    h1 = jnp.dot(x, w1_ref[...], preferred_element_type=jnp.float32) + b1_ref[...]
    h1 = jnp.maximum(h1, 0.0).astype(w2_ref.dtype)

    # fc2 + ReLU
    h2 = jnp.dot(h1, w2_ref[...], preferred_element_type=jnp.float32) + b2_ref[...]
    h2 = jnp.maximum(h2, 0.0).astype(w3_ref.dtype)

    # fc3 (no nonlinearity), compact (TB, ACTION_DIM) store (masked vst, f32 for training use)
    logits = jnp.dot(h2, w3_ref[...], preferred_element_type=jnp.float32) + b3_ref[...]
    o_ref[...] = logits.astype(o_ref.dtype)


@functools.partial(jax.jit, static_argnums=(2,))
def _forward_jit(feature, params, tb):
    w1, b1, w2, b2, w3, b3 = params                                   # weights already in compute dtype
    B, D = feature.shape

    grid = (pl.cdiv(B, tb),)                                          # partial last block masked by Pallas

    w_itemsize = jnp.dtype(w1.dtype).itemsize
    flops = 2 * B * (D * HIDDEN1 + HIDDEN1 * HIDDEN2 + HIDDEN2 * ACTION_DIM)
    bytes_accessed = (
        B * D * jnp.dtype(feature.dtype).itemsize                                   # activations in
        + (D * HIDDEN1 + HIDDEN1 * HIDDEN2 + HIDDEN2 * ACTION_DIM) * w_itemsize     # weights
        + (HIDDEN1 + HIDDEN2 + ACTION_DIM) * 4                                      # biases (f32)
        + B * ACTION_DIM * 4                                                        # output (f32)
    )

    return pl.pallas_call(
        mlp_kernel,
        out_shape=jax.ShapeDtypeStruct((B, ACTION_DIM), jnp.float32),
        grid=grid,
        in_specs=[
            pl.BlockSpec((tb, D), lambda i: (i, 0)),                  # activation tile (pipelined)
            pl.BlockSpec((D, HIDDEN1), lambda i: (0, 0)),             # W1, VMEM-resident
            pl.BlockSpec((1, HIDDEN1), lambda i: (0, 0)),             # b1 (f32)
            pl.BlockSpec((HIDDEN1, HIDDEN2), lambda i: (0, 0)),       # W2
            pl.BlockSpec((1, HIDDEN2), lambda i: (0, 0)),             # b2 (f32)
            pl.BlockSpec((HIDDEN2, ACTION_DIM), lambda i: (0, 0)),    # W3 (compact, 8-wide)
            pl.BlockSpec((1, ACTION_DIM), lambda i: (0, 0)),          # b3 (f32)
        ],
        out_specs=pl.BlockSpec((tb, ACTION_DIM), lambda i: (i, 0)),
        # TODO(synk): on v7x use pltpu.CORE_PARALLEL on the batch axis to split grid steps
        # across both TensorCores; kept "parallel" here for portability across v5e/v6e/v7x.
        compiler_params=pltpu.CompilerParams(
            dimension_semantics=("parallel",),
        ),
        cost_estimate=pl.CostEstimate(
            flops=flops, transcendentals=0, bytes_accessed=bytes_accessed),
    )(feature, w1, b1, w2, b2, w3, b3)


def model_forward(feature, kernel_params, *, batch_tile=DEFAULT_BATCH_TILE):
    """Forward pass of Model.forward(feature) -> logits of shape [B, ACTION_DIM]."""
    B = feature.shape[0]
    # never tile bigger than the (8-rounded) batch; keep multiples of 8 for sublane alignment
    tb = min(batch_tile, _round_up(B, 8))
    # TODO(synk): for a tight per-step inference loop (B<=8), pin the weights in VMEM across
    # calls via the cross-pallas_call prefetch/futures pattern instead of re-DMAing them.
    return _forward_jit(feature, kernel_params, tb)


# ----- parameter construction (matches make_fc_layer: orthogonal weights, zero bias) -----
def init_params(key):
    """PyTorch Linear weight is [out, in]; we store the transpose [in, out]."""
    k1, k2, k3 = jax.random.split(key, 3)
    ortho = jax.nn.initializers.orthogonal()
    w1 = ortho(k1, (HIDDEN1, DIM_OF_OBSERVATION), jnp.float32).T     # [64, 256]
    w2 = ortho(k2, (HIDDEN2, HIDDEN1), jnp.float32).T                # [256, 128]
    w3 = ortho(k3, (ACTION_DIM, HIDDEN2), jnp.float32).T             # [128, 8]
    b1 = jnp.zeros((HIDDEN1,), jnp.float32)
    b2 = jnp.zeros((HIDDEN2,), jnp.float32)
    b3 = jnp.zeros((ACTION_DIM,), jnp.float32)
    return w1, b1, w2, b2, w3, b3


def prep_params(params, compute_dtype=jnp.float32):
    """One-time prep: pre-cast weights to the compute dtype (bf16 on v6e/v7x/v5e MXU path),
    keep biases f32 (VPU epilogue), reshape biases to (1, N) for a 2-D VMEM block."""
    w1, b1, w2, b2, w3, b3 = params
    return (
        w1.astype(compute_dtype), b1.reshape(1, -1).astype(jnp.float32),
        w2.astype(compute_dtype), b2.reshape(1, -1).astype(jnp.float32),
        w3.astype(compute_dtype), b3.reshape(1, -1).astype(jnp.float32),
    )


def reference_forward(feature, params):
    w1, b1, w2, b2, w3, b3 = params
    h1 = jnp.maximum(feature @ w1 + b1, 0.0)
    h2 = jnp.maximum(h1 @ w2 + b2, 0.0)
    return h2 @ w3 + b3


if __name__ == "__main__":
    key = jax.random.PRNGKey(0)
    k_param, k_x1, k_x2 = jax.random.split(key, 3)

    raw_params = init_params(k_param)
    params_f32 = prep_params(raw_params, jnp.float32)
    params_bf16 = prep_params(raw_params, jnp.bfloat16)

    # small inference-style batch (B=2 -> tb=8, single partial block)
    feat_small = jax.random.normal(k_x1, (2, DIM_OF_OBSERVATION), jnp.float32)
    out_small = jax.block_until_ready(model_forward(feat_small, params_f32))
    ref_small = reference_forward(feat_small, raw_params)
    assert out_small.shape == (2, ACTION_DIM)
    assert jnp.allclose(out_small, ref_small, atol=1e-4, rtol=1e-4), "f32 small-batch mismatch"

    # larger replay/training-style batch: single big (partial) tile with the default TB
    feat_big = jax.random.normal(k_x2, (300, DIM_OF_OBSERVATION), jnp.float32)
    out_big = jax.block_until_ready(model_forward(feat_big, params_f32))
    ref_big = reference_forward(feat_big, raw_params)
    assert out_big.shape == (300, ACTION_DIM)
    assert jnp.allclose(out_big, ref_big, atol=1e-4, rtol=1e-4), "f32 big-batch mismatch"

    # multi-step grid + partial last block (exercises the batch pipeline / write masking)
    out_tiled = jax.block_until_ready(model_forward(feat_big, params_f32, batch_tile=128))
    assert jnp.allclose(out_tiled, ref_big, atol=1e-4, rtol=1e-4), "multi-tile mismatch"

    # bf16 compute path (bf16 weights/activations into the MXU, f32 accumulation + epilogue)
    out_bf16 = jax.block_until_ready(model_forward(feat_big, params_bf16))
    assert out_bf16.shape == (300, ACTION_DIM)
    assert jnp.allclose(out_bf16, ref_big, atol=5e-2, rtol=5e-2), "bf16 path mismatch"

    print("KERNEL_OK")
</pallas_src>

<mosaic_0001>
module attributes {stable_mosaic.version = 11 : i64} {
  func.func @mlp_kernel(%arg0: i32, %arg1: memref<8x64xf32, #tpu.memory_space<vmem>>, %arg2: memref<64x256xf32, #tpu.memory_space<vmem>>, %arg3: memref<1x256xf32, #tpu.memory_space<vmem>>, %arg4: memref<256x128xf32, #tpu.memory_space<vmem>>, %arg5: memref<1x128xf32, #tpu.memory_space<vmem>>, %arg6: memref<128x8xf32, #tpu.memory_space<vmem>>, %arg7: memref<1x8xf32, #tpu.memory_space<vmem>>, %arg8: memref<8x8xf32, #tpu.memory_space<vmem>>) attributes {dimension_semantics = [#tpu.dimension_semantics<parallel>], iteration_bounds = array<i64: 1>, scalar_prefetch = 0 : i64, scratch_operands = 0 : i64, tpu.core_type = #tpu.core_type<tc>, window_params = [{transform_indices = @transform_0, window_bounds = array<i64: 8, 64>}, {pipeline_mode = #tpu.pipeline_mode<synchronous>, transform_indices = @transform_1, window_bounds = array<i64: 64, 256>}, {pipeline_mode = #tpu.pipeline_mode<synchronous>, transform_indices = @transform_2, window_bounds = array<i64: 1, 256>}, {pipeline_mode = #tpu.pipeline_mode<synchronous>, transform_indices = @transform_3, window_bounds = array<i64: 256, 128>}, {pipeline_mode = #tpu.pipeline_mode<synchronous>, transform_indices = @transform_4, window_bounds = array<i64: 1, 128>}, {pipeline_mode = #tpu.pipeline_mode<synchronous>, transform_indices = @transform_5, window_bounds = array<i64: 128, 8>}, {pipeline_mode = #tpu.pipeline_mode<synchronous>, transform_indices = @transform_6, window_bounds = array<i64: 1, 8>}, {transform_indices = @transform_7, window_bounds = array<i64: 8, 8>}]} {
    %c0 = arith.constant 0 : index
    %c0_0 = arith.constant 0 : index
    %0 = vector.load %arg1[%c0, %c0_0] : memref<8x64xf32, #tpu.memory_space<vmem>>, vector<8x64xf32>
    %c0_1 = arith.constant 0 : index
    %c0_2 = arith.constant 0 : index
    %1 = vector.load %arg2[%c0_1, %c0_2] : memref<64x256xf32, #tpu.memory_space<vmem>>, vector<64x256xf32>
    %cst = arith.constant dense<0.000000e+00> : vector<8x256xf32>
    %2 = tpu.matmul %0, %1, %cst {dimension_numbers = #tpu.dot_dimension_numbers<[1], [0], [0], [1], [0, 0, 1, 1], [], []>} : vector<8x64xf32>, vector<64x256xf32>, vector<8x256xf32> -> vector<8x256xf32>
    %c0_3 = arith.constant 0 : index
    %c0_4 = arith.constant 0 : index
    %3 = vector.load %arg3[%c0_3, %c0_4] : memref<1x256xf32, #tpu.memory_space<vmem>>, vector<1x256xf32>
    %4 = vector.broadcast %3 : vector<1x256xf32> to vector<8x256xf32>
    %5 = arith.addf %2, %4 : vector<8x256xf32>
    %cst_5 = arith.constant 0.000000e+00 : f32
    %6 = vector.broadcast %cst_5 : f32 to vector<8x256xf32>
    %7 = arith.maximumf %5, %6 : vector<8x256xf32>
    %c0_6 = arith.constant 0 : index
    %c0_7 = arith.constant 0 : index
    %8 = vector.load %arg4[%c0_6, %c0_7] : memref<256x128xf32, #tpu.memory_space<vmem>>, vector<256x128xf32>
    %cst_8 = arith.constant dense<0.000000e+00> : vector<8x128xf32>
    %9 = tpu.matmul %7, %8, %cst_8 {dimension_numbers = #tpu.dot_dimension_numbers<[1], [0], [0], [1], [0, 0, 1, 1], [], []>} : vector<8x256xf32>, vector<256x128xf32>, vector<8x128xf32> -> vector<8x128xf32>
    %c0_9 = arith.constant 0 : index
    %c0_10 = arith.constant 0 : index
    %10 = vector.load %arg5[%c0_9, %c0_10] : memref<1x128xf32, #tpu.memory_space<vmem>>, vector<1x128xf32>
    %11 = vector.broadcast %10 : vector<1x128xf32> to vector<8x128xf32>
    %12 = arith.addf %9, %11 : vector<8x128xf32>
    %cst_11 = arith.constant 0.000000e+00 : f32
    %13 = vector.broadcast %cst_11 : f32 to vector<8x128xf32>
    %14 = arith.maximumf %12, %13 : vector<8x128xf32>
    %c0_12 = arith.constant 0 : index
    %c0_13 = arith.constant 0 : index
    %15 = vector.load %arg6[%c0_12, %c0_13] : memref<128x8xf32, #tpu.memory_space<vmem>>, vector<128x8xf32>
    %cst_14 = arith.constant dense<0.000000e+00> : vector<8x8xf32>
    %16 = tpu.matmul %14, %15, %cst_14 {dimension_numbers = #tpu.dot_dimension_numbers<[1], [0], [0], [1], [0, 0, 1, 1], [], []>} : vector<8x128xf32>, vector<128x8xf32>, vector<8x8xf32> -> vector<8x8xf32>
    %c0_15 = arith.constant 0 : index
    %c0_16 = arith.constant 0 : index
    %17 = vector.load %arg7[%c0_15, %c0_16] : memref<1x8xf32, #tpu.memory_space<vmem>>, vector<1x8xf32>
    %18 = vector.broadcast %17 : vector<1x8xf32> to vector<8x8xf32>
    %19 = arith.addf %16, %18 : vector<8x8xf32>
    %c0_17 = arith.constant 0 : index
    %c0_18 = arith.constant 0 : index
    %20 = vector.load %arg8[%c0_17, %c0_18] : memref<8x8xf32, #tpu.memory_space<vmem>>, vector<8x8xf32>
    tpu.vector_store %arg8[%c0_17, %c0_18], %19 {strides = array<i32>} : memref<8x8xf32, #tpu.memory_space<vmem>>, vector<8x8xf32>,
    return
  }
  func.func @transform_0(%arg0: i32) -> (i32, i32) {
    %c0_i32 = arith.constant 0 : i32
    %c0_i32_0 = arith.constant 0 : i32
    return %arg0, %c0_i32 : i32, i32
  }
  func.func @transform_1(%arg0: i32) -> (i32, i32) {
    %c0_i32 = arith.constant 0 : i32
    %c0_i32_0 = arith.constant 0 : i32
    %c0_i32_1 = arith.constant 0 : i32
    return %c0_i32, %c0_i32_0 : i32, i32
  }
  func.func @transform_2(%arg0: i32) -> (i32, i32) {
    %c0_i32 = arith.constant 0 : i32
    %c0_i32_0 = arith.constant 0 : i32
    %c0_i32_1 = arith.constant 0 : i32
    return %c0_i32, %c0_i32_0 : i32, i32
  }
  func.func @transform_3(%arg0: i32) -> (i32, i32) {
    %c0_i32 = arith.constant 0 : i32
    %c0_i32_0 = arith.constant 0 : i32
    %c0_i32_1 = arith.constant 0 : i32
    return %c0_i32, %c0_i32_0 : i32, i32
  }
  func.func @transform_4(%arg0: i32) -> (i32, i32) {
    %c0_i32 = arith.constant 0 : i32
    %c0_i32_0 = arith.constant 0 : i32
    %c0_i32_1 = arith.constant 0 : i32
    return %c0_i32, %c0_i32_0 : i32, i32
  }
  func.func @transform_5(%arg0: i32) -> (i32, i32) {
    %c0_i32 = arith.constant 0 : i32
    %c0_i32_0 = arith.constant 0 : i32
    %c0_i32_1 = arith.constant 0 : i32
    return %c0_i32, %c0_i32_0 : i32, i32
  }
  func.func @transform_6(%arg0: i32) -> (i32, i32) {
    %c0_i32 = arith.constant 0 : i32
    %c0_i32_0 = arith.constant 0 : i32
    %c0_i32_1 = arith.constant 0 : i32
    return %c0_i32, %c0_i32_0 : i32, i32
  }
  func.func @transform_7(%arg0: i32) -> (i32, i32) {
    %c0_i32 = arith.constant 0 : i32
    %c0_i32_0 = arith.constant 0 : i32
    return %arg0, %c0_i32 : i32, i32
  }
}

</mosaic_0001>

<llo_original>
// kernel: _forward_jit.1
$region0: #{_forward_jit.1}
  #allocation0 [shape = 'u32[]', space=smem, size = 0x4, offset = 0x4, fixed_abs, tag = 'smem constant byte address 0x4 - core index']
  #allocation1 [shape = 'u32[72,128]{1,0:T(1,128)}', space=vmem, size = 0x9000, scoped, tag = 'internal scratch']
  %s0 = inlined_call_operand.vmem [shape: f32[2,64], index: 0, kind: input, shape index: {}]
  %s1 = inlined_call_operand.vmem [shape: f32[64,256], index: 1, kind: input, shape index: {}]
  %s2 = inlined_call_operand.vmem [shape: f32[1,256], index: 2, kind: input, shape index: {}]
  %s3 = inlined_call_operand.hbm [shape: f32[256,128], index: 3, kind: input, shape index: {}]
  %s4 = inlined_call_operand.vmem [shape: f32[1,128], index: 4, kind: input, shape index: {}]
  %s5 = inlined_call_operand.vmem [shape: f32[128,8], index: 5, kind: input, shape index: {}]
  %s6 = inlined_call_operand.vmem [shape: f32[1,8], index: 6, kind: input, shape index: {}]
  %s7 = inlined_call_operand.hbm [shape: f32[2,8], index: 7, kind: output, shape index: {}]
  %s8 = sld [smem:[#allocation0]]
  $region42: #{_forward_jit.1} parent=0
    _
  %s10 = ssub.s32 1, %s8
  %s11 = scalar_select 0, %s10, %s8
  $region1: #{_forward_jit.1} parent=0
    #allocation2 [shape = 'u8[131072]{0}', space=vmem, size = 0x20000, scoped, tag = 'input window, operand 3, single buffered']
    #allocation3 [shape = 's32[1]{0}', space=sflag, size = 0x4, scoped, tag = 'scoped memory for _forward_jit.1']
    #allocation4 [shape = 's32[1]{0}', space=sflag, size = 0x4, scoped, tag = 'scoped memory for _forward_jit.1']
    #allocation5 [shape = 'u8[4096]{0}', space=vmem, size = 0x1000, scoped, tag = 'output window, operand 0, single buffered']
    %12 = vsyncpa [#allocation3], 0
    %13 = vsyncpa [#allocation4], 0
    // Predicated region
    $region2: #{_forward_jit.1} parent=1 // pred_check
      _
    $region3: #{_forward_jit.1} parent=1 // pred_check_branch
      %15 = sbr.rel (0) target = $region5
    $region4: #{_forward_jit.1} parent=1 // pred_region
      _
    $region5: #{_forward_jit.1} parent=1 // pred_fallthru
      _
    // Predicated region
    $region6: #{_forward_jit.1} parent=1 // pred_check
      _
    $region7: #{_forward_jit.1} parent=1 // pred_check_branch
      %17 = sbr.rel (0) target = $region9
    $region8: #{_forward_jit.1} parent=1 // pred_region
      _
    $region9: #{_forward_jit.1} parent=1 // pred_fallthru
      _
    // Predicated region
    $region10: #{_forward_jit.1} parent=1 // pred_check
      _
    $region11: #{_forward_jit.1} parent=1 // pred_check_branch
      %19 = sbr.rel (0) target = $region13
    $region12: #{_forward_jit.1} parent=1 // pred_region
      _
    $region13: #{_forward_jit.1} parent=1 // pred_fallthru
      _
    // Predicated region
    $region14: #{_forward_jit.1} parent=1 // pred_check
      _
    $region15: #{_forward_jit.1} parent=1 // pred_check_branch
      %21 = sbr.rel (0) target = $region17
    $region16: #{_forward_jit.1} parent=1 // pred_region
      %23 = vsyncadd [#allocation3], 0
      %s24 = sshll.u32 %s3, 4
      %s25 = int_to_ptr.hbm [resolvable:$true] %s24
      %s26 = sshll.u32 [#allocation2], 4
      %s27 = int_to_ptr.vmem [resolvable:$true] %s26
      %32 = dma.hbm_to_vmem [thread:$0]  %s25, 4096, %s27, [#allocation3], 128, 128, 8
    $region17: #{_forward_jit.1} parent=1 // pred_fallthru
      _
    // Predicated region
    $region18: #{_forward_jit.1} parent=1 // pred_check
      _
    $region19: #{_forward_jit.1} parent=1 // pred_check_branch
      %34 = sbr.rel (0) target = $region21
    $region20: #{_forward_jit.1} parent=1 // pred_region
      _
    $region21: #{_forward_jit.1} parent=1 // pred_fallthru
      _
    // Predicated region
    $region22: #{_forward_jit.1} parent=1 // pred_check
      _
    $region23: #{_forward_jit.1} parent=1 // pred_check_branch
      %36 = sbr.rel (0) target = $region25
    $region24: #{_forward_jit.1} parent=1 // pred_region
      _
    $region25: #{_forward_jit.1} parent=1 // pred_fallthru
      _
    // Predicated region
    $region26: #{_forward_jit.1} parent=1 // pred_check
      _
    $region27: #{_forward_jit.1} parent=1 // pred_check_branch
      %38 = sbr.rel (0) target = $region29
    $region28: #{_forward_jit.1} parent=1 // pred_region
      _
    $region29: #{_forward_jit.1} parent=1 // pred_fallthru
      _
    // Predicated region
    $region30: #{_forward_jit.1} parent=1 // pred_check
      _
    $region31: #{_forward_jit.1} parent=1 // pred_check_branch
      %40 = sbr.rel (0) target = $region33
    $region32: #{_forward_jit.1} parent=1 // pred_region
      %42 = dma.done [#allocation3], 4096
    $region33: #{_forward_jit.1} parent=1 // pred_fallthru
      _
    %v43 = vld [vmem:[%s0] sm:$0xff]
    %v44 = vld [vmem:[%s1] sm:$0xff]
    %v45 = vld [vmem:[%s1 + $0x8] sm:$0xff]
    %v46 = vld [vmem:[%s1 + $0x10] sm:$0xff]
    %v47 = vld [vmem:[%s1 + $0x18] sm:$0xff]
    %v48 = vld [vmem:[%s1 + $0x20] sm:$0xff]
    %v49 = vld [vmem:[%s1 + $0x28] sm:$0xff]
    %v50 = vld [vmem:[%s1 + $0x30] sm:$0xff]
    %v51 = vld [vmem:[%s1 + $0x38] sm:$0xff]
    %v52 = vld [vmem:[%s1 + $0x40] sm:$0xff]
    %v53 = vld [vmem:[%s1 + $0x48] sm:$0xff]
    %v54 = vld [vmem:[%s1 + $0x50] sm:$0xff]
    %v55 = vld [vmem:[%s1 + $0x58] sm:$0xff]
    %v56 = vld [vmem:[%s1 + $0x60] sm:$0xff]
    %v57 = vld [vmem:[%s1 + $0x68] sm:$0xff]
    %v58 = vld [vmem:[%s1 + $0x70] sm:$0xff]
    %v59 = vld [vmem:[%s1 + $0x78] sm:$0xff]
    %v60 = vld [vmem:[%s2] sm:$0x3]
    %v62 = vperm.slane %v60, 0
    %v63 = vperm.slane %v60, 1
    %vm66 = vcmask 523264
    %v68 = vsel %vm66, %v43, 0
    %70 = vmatpush.msra.mxu0 0.0
    %71 = vmatpush.msra.mxu0 0.0
    %72 = vmatpush.msra.mxu0 0.0
    %73 = vmatpush.msra.mxu0 0.0
    %74 = vmatpush.msra.mxu0 0.0
    %75 = vmatpush.msra.mxu0 0.0
    %76 = vmatpush.msra.mxu0 0.0
    %77 = vmatpush.msra.mxu0 0.0
    %78 = vmatpush.msra.mxu0 %v58
    %79 = vmatpush.msra.mxu0 %v56
    %80 = vmatpush.msra.mxu0 %v54
    %81 = vmatpush.msra.mxu0 %v52
    %82 = vmatpush.msra.mxu0 %v50
    %83 = vmatpush.msra.mxu0 %v48
    %84 = vmatpush.msra.mxu0 %v46
    %85 = vmatpush.msra.mxu0 %v44
    %86 = vmatmul.f32.gmra.mxu0 %v68
    %v87 = vpop.f32.mrf.mxu0
    %v88 = vadd.f32 %v62, %v87
    %89 = vdwg.mxu0
    %90 = vmatpush.msra.mxu0 0.0
    %91 = vmatpush.msra.mxu0 0.0
    %92 = vmatpush.msra.mxu0 0.0
    %93 = vmatpush.msra.mxu0 0.0
    %94 = vmatpush.msra.mxu0 0.0
    %95 = vmatpush.msra.mxu0 0.0
    %96 = vmatpush.msra.mxu0 0.0
    %97 = vmatpush.msra.mxu0 0.0
    %98 = vmatpush.msra.mxu0 %v59
    %99 = vmatpush.msra.mxu0 %v57
    %100 = vmatpush.msra.mxu0 %v55
    %101 = vmatpush.msra.mxu0 %v53
    %102 = vmatpush.msra.mxu0 %v51
    %103 = vmatpush.msra.mxu0 %v49
    %104 = vmatpush.msra.mxu0 %v47
    %105 = vmatpush.msra.mxu0 %v45
    %106 = vmatmul.f32.gmra.mxu0 %v68
    %v107 = vpop.f32.mrf.mxu0
    %v108 = vadd.f32 %v63, %v107
    %109 = vdwg.mxu0
    %v110 = vmax.f32 %v88, 0.0
    %v111 = vmax.f32 %v108, 0.0
    %v112 = vld [vmem:[#allocation2] sm:$0xff]
    %v113 = vld [vmem:[#allocation2 + $0x8] sm:$0xff]
    %v114 = vld [vmem:[#allocation2 + $0x10] sm:$0xff]
    %v115 = vld [vmem:[#allocation2 + $0x18] sm:$0xff]
    %v116 = vld [vmem:[#allocation2 + $0x20] sm:$0xff]
    %v117 = vld [vmem:[#allocation2 + $0x28] sm:$0xff]
    %v118 = vld [vmem:[#allocation2 + $0x30] sm:$0xff]
    %v119 = vld [vmem:[#allocation2 + $0x38] sm:$0xff]
    %v120 = vld [vmem:[#allocation2 + $0x40] sm:$0xff]
    %v121 = vld [vmem:[#allocation2 + $0x48] sm:$0xff]
    %v122 = vld [vmem:[#allocation2 + $0x50] sm:$0xff]
    %v123 = vld [vmem:[#allocation2 + $0x58] sm:$0xff]
    %v124 = vld [vmem:[#allocation2 + $0x60] sm:$0xff]
    %v125 = vld [vmem:[#allocation2 + $0x68] sm:$0xff]
    %v126 = vld [vmem:[#allocation2 + $0x70] sm:$0xff]
    %v127 = vld [vmem:[#allocation2 + $0x78] sm:$0xff]
    %v128 = vld [vmem:[#allocation2 + $0x80] sm:$0xff]
    %v129 = vld [vmem:[#allocation2 + $0x88] sm:$0xff]
    %v130 = vld [vmem:[#allocation2 + $0x90] sm:$0xff]
    %v131 = vld [vmem:[#allocation2 + $0x98] sm:$0xff]
    %v132 = vld [vmem:[#allocation2 + $0xa0] sm:$0xff]
    %v133 = vld [vmem:[#allocation2 + $0xa8] sm:$0xff]
    %v134 = vld [vmem:[#allocation2 + $0xb0] sm:$0xff]
    %v135 = vld [vmem:[#allocation2 + $0xb8] sm:$0xff]
    %v136 = vld [vmem:[#allocation2 + $0xc0] sm:$0xff]
    %v137 = vld [vmem:[#allocation2 + $0xc8] sm:$0xff]
    %v138 = vld [vmem:[#allocation2 + $0xd0] sm:$0xff]
    %v139 = vld [vmem:[#allocation2 + $0xd8] sm:$0xff]
    %v140 = vld [vmem:[#allocation2 + $0xe0] sm:$0xff]
    %v141 = vld [vmem:[#allocation2 + $0xe8] sm:$0xff]
    %v142 = vld [vmem:[#allocation2 + $0xf0] sm:$0xff]
    %v143 = vld [vmem:[#allocation2 + $0xf8] sm:$0xff]
    %v144 = vld [vmem:[%s4] sm:$0x1]
    %v146 = vperm.slane %v144, 0
    %148 = vmatpush.msra.mxu0 %v127
    %149 = vmatpush.msra.mxu0 %v126
    %150 = vmatpush.msra.mxu0 %v125
    %151 = vmatpush.msra.mxu0 %v124
    %152 = vmatpush.msra.mxu0 %v123
    %153 = vmatpush.msra.mxu0 %v122
    %154 = vmatpush.msra.mxu0 %v121
    %155 = vmatpush.msra.mxu0 %v120
    %156 = vmatpush.msra.mxu0 %v119
    %157 = vmatpush.msra.mxu0 %v118
    %158 = vmatpush.msra.mxu0 %v117
    %159 = vmatpush.msra.mxu0 %v116
    %160 = vmatpush.msra.mxu0 %v115
    %161 = vmatpush.msra.mxu0 %v114
    %162 = vmatpush.msra.mxu0 %v113
    %163 = vmatpush.msra.mxu0 %v112
    %164 = vmatmul.f32.gmra.mxu0 %v110
    %v165 = vpop.f32.mrf.mxu0
    %v166 = vadd.f32 %v146, %v165
    %167 = vdwg.mxu0
    %168 = vmatpush.msra.mxu0 %v143
    %169 = vmatpush.msra.mxu0 %v142
    %170 = vmatpush.msra.mxu0 %v141
    %171 = vmatpush.msra.mxu0 %v140
    %172 = vmatpush.msra.mxu0 %v139
    %173 = vmatpush.msra.mxu0 %v138
    %174 = vmatpush.msra.mxu0 %v137
    %175 = vmatpush.msra.mxu0 %v136
    %176 = vmatpush.msra.mxu0 %v135
    %177 = vmatpush.msra.mxu0 %v134
    %178 = vmatpush.msra.mxu0 %v133
    %179 = vmatpush.msra.mxu0 %v132
    %180 = vmatpush.msra.mxu0 %v131
    %181 = vmatpush.msra.mxu0 %v130
    %182 = vmatpush.msra.mxu0 %v129
    %183 = vmatpush.msra.mxu0 %v128
    %184 = vmatmul.f32.gmra.mxu0 %v111
    %v185 = vpop.f32.mrf.mxu0
    %v186 = vadd.f32 %v166, %v185
    %187 = vdwg.mxu0
    %v188 = vmax.f32 %v186, 0.0
    %v189 = vld [vmem:[%s5] sm:$0xff]
    %v190 = vld [vmem:[%s5 + $0x8] sm:$0xff]
    %v191 = vld [vmem:[%s5 + $0x10] sm:$0xff]
    %v192 = vld [vmem:[%s5 + $0x18] sm:$0xff]
    %v193 = vld [vmem:[%s5 + $0x20] sm:$0xff]
    %v194 = vld [vmem:[%s5 + $0x28] sm:$0xff]
    %v195 = vld [vmem:[%s5 + $0x30] sm:$0xff]
    %v196 = vld [vmem:[%s5 + $0x38] sm:$0xff]
    %v197 = vld [vmem:[%s5 + $0x40] sm:$0xff]
    %v198 = vld [vmem:[%s5 + $0x48] sm:$0xff]
    %v199 = vld [vmem:[%s5 + $0x50] sm:$0xff]
    %v200 = vld [vmem:[%s5 + $0x58] sm:$0xff]
    %v201 = vld [vmem:[%s5 + $0x60] sm:$0xff]
    %v202 = vld [vmem:[%s5 + $0x68] sm:$0xff]
    %v203 = vld [vmem:[%s5 + $0x70] sm:$0xff]
    %v204 = vld [vmem:[%s5 + $0x78] sm:$0xff]
    %v205 = vld [vmem:[%s6] sm:$0x1]
    %v207 = vperm.slane %v205, 0
    %209 = vmatpush.msra.mxu0 %v204
    %210 = vmatpush.msra.mxu0 %v203
    %211 = vmatpush.msra.mxu0 %v202
    %212 = vmatpush.msra.mxu0 %v201
    %213 = vmatpush.msra.mxu0 %v200
    %214 = vmatpush.msra.mxu0 %v199
    %215 = vmatpush.msra.mxu0 %v198
    %216 = vmatpush.msra.mxu0 %v197
    %217 = vmatpush.msra.mxu0 %v196
    %218 = vmatpush.msra.mxu0 %v195
    %219 = vmatpush.msra.mxu0 %v194
    %220 = vmatpush.msra.mxu0 %v193
    %221 = vmatpush.msra.mxu0 %v192
    %222 = vmatpush.msra.mxu0 %v191
    %223 = vmatpush.msra.mxu0 %v190
    %224 = vmatpush.msra.mxu0 %v189
    %225 = vmatmul.f32.gmra.mxu0 %v188
    %v226 = vpop.f32.mrf.mxu0
    %v227 = vadd.f32 %v207, %v226
    %228 = vdwg.mxu0
    %vm229 = vcmask 64512
    %230 = vst.msk [vmem:[#allocation5] sm:$0xff] %vm229, %v227
    // Predicated region
    $region34: #{_forward_jit.1} parent=1 // pred_check
      _
    $region35: #{_forward_jit.1} parent=1 // pred_check_branch
      %232 = sbr.rel (0) target = $region37
    $region36: #{_forward_jit.1} parent=1 // pred_region
      %234 = vsyncadd [#allocation4], 96
      %s235 = sshll.u32 [#allocation5], 4
      %s236 = int_to_ptr.vmem [resolvable:$true] %s235
      %s237 = sshll.u32 %s7, 4
      %s238 = int_to_ptr.hbm [resolvable:$true] %s237
      %243 = dma.vmem_to_hbm [thread:$0]  %s236, 32, %s238, [#allocation4], 32, 32, 2
    $region37: #{_forward_jit.1} parent=1 // pred_fallthru
      _
    // Predicated region
    $region38: #{_forward_jit.1} parent=1 // pred_check
      _
    $region39: #{_forward_jit.1} parent=1 // pred_check_branch
      %245 = sbr.rel (0) target = $region41
    $region40: #{_forward_jit.1} parent=1 // pred_region
      %247 = dma.done [#allocation4], 128
    $region41: #{_forward_jit.1} parent=1 // pred_fallthru
      _
    %248 = vsyncpa [#allocation3], 1
    %249 = vsyncpa [#allocation4], 1

</llo_original>
